<compile_context>
chip_gen: v6e
topology: v6e:2x2x1
jax: 0.10.0
libtpu: 0.0.40
codegen_flags: <defaults>
</compile_context>

<pallas_src>
import numpy as np
import jax
from jax import lax
import jax.numpy as jnp
from jax.experimental import pallas as pl
from jax.experimental.pallas import tpu as pltpu


# ----------------------------------------------------------------------------
# Host-side glue: PIL/torchvision-style bicubic antialias resampling matrices.
# ----------------------------------------------------------------------------
def _bicubic_filter(x, a=-0.5):
    x = np.abs(x)
    return np.where(
        x < 1.0,
        ((a + 2.0) * x - (a + 3.0)) * x * x + 1.0,
        np.where(x < 2.0, (((x - 5.0) * x + 8.0) * x - 4.0) * a, 0.0),
    )


def _resize_weight_matrix(in_size, out_size):
    """Dense (out_size, in_size) bicubic antialias resampling matrix."""
    support = 2.0
    scale = in_size / out_size
    ss = max(scale, 1.0)  # antialias: widen the filter when downscaling
    W = np.zeros((out_size, in_size), dtype=np.float64)
    for i in range(out_size):
        center = (i + 0.5) * scale
        span = support * ss
        xmin = max(int(center - span + 0.5), 0)
        xmax = min(int(center + span + 0.5), in_size)
        js = np.arange(xmin, xmax)
        w = _bicubic_filter((js + 0.5 - center) / ss)
        W[i, xmin:xmax] = w / w.sum()
    return W.astype(np.float32)


def _resized_size(h, w, size):
    # torchvision Resize([size]): resize the smaller edge to `size`.
    if h <= w:
        return size, int(size * w / h)
    return int(size * h / w), size


# ----------------------------------------------------------------------------
# Kernel: grid = (batch blocks, channels, W chunks); one (nb, H_band, Wc)
# image-channel chunk per step, accumulated straight into the output block.
# ----------------------------------------------------------------------------
def _transform_kernel(x_ref, whh_ref, whl_ref, wwt_ref, a_ref, b_ref, o_ref):
    # x_ref:       (nb, H_band, Wc) int8 (bit-cast uint8)
    # whh/whl_ref: (S, H_band)      bf16 hi / lo halves of the height weights
    # wwt_ref:     (Wc, S)          f32 width weights for the current chunk
    # a_ref/b_ref: (C,)             f32 per-channel scale / shift (SMEM)
    # o_ref:       (nb, S, S)       f32 output block, doubles as accumulator
    c = pl.program_id(1)
    k = pl.program_id(2)
    nb = x_ref.shape[0]

    @pl.when(k == 0)
    def _init():
        o_ref[...] = jnp.zeros_like(o_ref)

    wh_hi = whh_ref[...]
    wh_lo = whl_ref[...]
    wwt = wwt_ref[...]
    for i in range(nb):
        # Decode bit-cast uint8: int8 -> f32 -> [0, 255]; 0..255 are exact in
        # bf16, so the cast for the MXU is lossless.  No ragged-lane mask is
        # needed: out-of-range W columns decode to finite values and always hit
        # exactly-zero rows of `wwt`.
        xi = x_ref[i].astype(jnp.float32)
        xi = jnp.where(xi < 0.0, xi + 256.0, xi).astype(jnp.bfloat16)

        # Stage 1 (height reduction): two bf16 MXU passes (hi + lo weights),
        # accumulated in f32 -- ~1.5-2.5x cheaper than the f32 matmul path
        # while keeping the <=1 uint8-LSB error budget.
        t = jnp.dot(wh_hi, xi, preferred_element_type=jnp.float32)
        t = t + jnp.dot(wh_lo, xi, preferred_element_type=jnp.float32)

        # Stage 2 (width reduction): f32, accumulated across W chunks directly
        # in the resident output block (no concat, no separate accumulator).
        # Precision pinned so the uint8 re-quantization below is stable.
        # TODO(synk): hi/lo-split `t` to run this in bf16 as well.
        o_ref[i] += jnp.dot(t, wwt, precision=lax.Precision.HIGHEST,
                            preferred_element_type=jnp.float32)

    @pl.when(k == pl.num_programs(2) - 1)
    def _finish():
        # Resize of a uint8 image rounds/clamps back to uint8, then
        # ConvertImageDtype(float) (/255) + Normalize fuse into y*a + b.
        y = jnp.clip(jnp.round(o_ref[...]), 0.0, 255.0)
        o_ref[...] = y * a_ref[c] + b_ref[c]


def transform_forward(x_u8, image_size, mean, std, *,
                      max_w_chunk=None, images_per_step=1):
    """x_u8: uint8 array (N, C, H, W). Returns float32 (N, C, S, S)."""
    assert x_u8.dtype == jnp.uint8, "expected a uint8 NCHW image tensor"
    N, C, H, W = (int(d) for d in x_u8.shape)
    S = int(image_size)
    assert len(mean) == C and len(std) == C

    new_h, new_w = _resized_size(H, W, S)
    assert new_h >= S and new_w >= S, "crop larger than resized image not supported"

    # Resampling matrices with the center crop fused in (output-row slice).
    Wh_full = _resize_weight_matrix(H, new_h)            # (new_h, H)
    Ww_full = _resize_weight_matrix(W, new_w)            # (new_w, W)
    top = int(round((new_h - S) / 2.0))
    left = int(round((new_w - S) / 2.0))
    Wh_c = np.ascontiguousarray(Wh_full[top:top + S])    # (S, H)
    Ww_c = np.ascontiguousarray(Ww_full[left:left + S])  # (S, W)

    # --- Trim the all-zero band the center crop leaves in the weights -------
    # Trailing H rows never referenced by the crop (portrait inputs); the
    # block height is kept a multiple of 32 for int8 sublane tiling.
    h_nz = np.flatnonzero(np.any(Wh_c != 0.0, axis=0))
    h1 = int(h_nz[-1]) + 1 if h_nz.size else H
    H_band = min(H, ((h1 + 31) // 32) * 32)
    Wh_c = Wh_c[:, :H_band]
    # Source W columns that carry nonzero weight: [w0, w1).  Whole leading and
    # trailing chunks outside this band are skipped by the grid below.
    w_nz = np.flatnonzero(np.any(Ww_c != 0.0, axis=0))
    w0 = int(w_nz[0]) if w_nz.size else 0
    w1 = int(w_nz[-1]) + 1 if w_nz.size else W

    # --- images per grid step (amortizes per-step overhead for small images) -
    nb = max(1, min(int(images_per_step), N))
    while N % nb:
        nb -= 1

    # --- generation-aware chunk size / VMEM budget ---------------------------
    try:
        vmem_cap = int(getattr(pltpu.get_tpu_info(), "vmem_capacity_bytes",
                               64 * 1024 * 1024))
    except Exception:
        vmem_cap = 64 * 1024 * 1024                      # conservative (v7x)
    budget = max(16 << 20, vmem_cap // 2 - (4 << 20))

    def step_bytes(wc):
        x_blk = nb * H_band * wc                         # int8 block (per buf)
        dec_tmp = nb * H_band * wc * 6                   # f32 + bf16 decode temps
        wh_blk = 2 * S * H_band * 2                      # hi+lo bf16 (per buf)
        ww_blk = wc * S * 4                              # per buffer
        t_tmp = S * wc * 4 * 2
        o_blk = nb * S * S * 4                           # per buffer
        return 2 * (x_blk + wh_blk + ww_blk + o_blk) + dec_tmp + t_tmp

    cap_chunk = int(max_w_chunk) if max_w_chunk else 2048
    if W <= cap_chunk and step_bytes(W) <= budget:
        Wc, k0, KW = W, 0, 1
        wwT = np.ascontiguousarray(Ww_c.T)               # (W, S)
    else:
        Wc = max(128, (min(cap_chunk, 4096) // 128) * 128)   # lane-aligned
        while Wc > 128 and step_bytes(Wc) > budget:
            Wc -= 128
        k0 = w0 // Wc                                    # skip leading chunks
        KW = max(1, -(-w1 // Wc) - k0)                   # drop trailing chunks
        lo, hi = k0 * Wc, min(W, (k0 + KW) * Wc)
        wwT = np.zeros((KW * Wc, S), np.float32)         # tail rows stay zero
        wwT[:hi - lo] = Ww_c.T[lo:hi]

    # --- bf16 hi/lo split of the height-reduction weights --------------------
    wh_f32 = jnp.asarray(Wh_c, dtype=jnp.float32)
    wh_hi = wh_f32.astype(jnp.bfloat16)
    wh_lo = (wh_f32 - wh_hi.astype(jnp.float32)).astype(jnp.bfloat16)

    mean_np = np.asarray(mean, dtype=np.float32)
    std_np = np.asarray(std, dtype=np.float32)
    a = jnp.asarray(1.0 / (255.0 * std_np))              # (C,)
    b = jnp.asarray(-mean_np / std_np)                   # (C,)

    # Same-width reinterpret; kernel decodes in-register (1 byte/pixel DMA).
    x_i8 = lax.bitcast_convert_type(x_u8, jnp.int8)

    est = step_bytes(Wc)
    vmem_limit = int(min(vmem_cap - (8 << 20),
                         max(32 << 20, 2 * est + (8 << 20))))

    cost = pl.CostEstimate(
        flops=int(2 * N * C * KW * Wc * S * (H_band + S)),
        transcendentals=0,
        bytes_accessed=int(N * C * H * W + N * C * S * S * 4
                           + 2 * S * H_band * 2 + wwT.size * 4 + 2 * C * 4),
    )

    out = pl.pallas_call(
        _transform_kernel,
        out_shape=jax.ShapeDtypeStruct((N, C, S, S), jnp.float32),
        grid=(N // nb, C, KW),
        in_specs=[
            pl.BlockSpec((nb, None, H_band, Wc),
                         lambda n, c, k, _k0=k0: (n, c, 0, k + _k0)),
            pl.BlockSpec((S, H_band), lambda n, c, k: (0, 0)),
            pl.BlockSpec((S, H_band), lambda n, c, k: (0, 0)),
            pl.BlockSpec((Wc, S), lambda n, c, k: (k, 0)),
            pl.BlockSpec(memory_space=pltpu.MemorySpace.SMEM),
            pl.BlockSpec(memory_space=pltpu.MemorySpace.SMEM),
        ],
        out_specs=pl.BlockSpec((nb, None, S, S), lambda n, c, k: (n, c, 0, 0)),
        compiler_params=pltpu.CompilerParams(
            dimension_semantics=("parallel", "parallel", "arbitrary"),
            vmem_limit_bytes=vmem_limit,
        ),
        cost_estimate=cost,
    )(x_i8, wh_hi, wh_lo, jnp.asarray(wwT), a, b)
    return out


# ----------------------------------------------------------------------------
# Pure-JAX reference (full f32) for a sanity check.
# ----------------------------------------------------------------------------
def _reference(x_u8, image_size, mean, std):
    N, C, H, W = x_u8.shape
    S = int(image_size)
    new_h, new_w = _resized_size(H, W, S)
    Wh = _resize_weight_matrix(H, new_h)
    Ww = _resize_weight_matrix(W, new_w)
    top = int(round((new_h - S) / 2.0))
    left = int(round((new_w - S) / 2.0))
    Wh_c = jnp.asarray(Wh[top:top + S])
    Ww_c = jnp.asarray(Ww[left:left + S])
    x = x_u8.astype(jnp.float32)
    hp = lax.Precision.HIGHEST
    y = jnp.einsum("oh,nchw->ncow", Wh_c, x, precision=hp)
    y = jnp.einsum("pw,ncow->ncop", Ww_c, y, precision=hp)
    y = jnp.clip(jnp.round(y), 0.0, 255.0) / 255.0
    mean = jnp.asarray(mean, dtype=jnp.float32).reshape(1, C, 1, 1)
    std = jnp.asarray(std, dtype=jnp.float32).reshape(1, C, 1, 1)
    return (y - mean) / std


if __name__ == "__main__":
    # CLIP-style per-channel statistics (as used for clip-rsicd).
    mean = (0.48145466, 0.4578275, 0.40821073)
    std = (0.26862954, 0.26130258, 0.27577711)
    key = jax.random.PRNGKey(0)

    def make(k, shape):
        return jax.random.randint(k, shape, 0, 256, dtype=jnp.int32).astype(jnp.uint8)

    def check(x, S, **kw):
        out = jax.block_until_ready(transform_forward(x, S, mean, std, **kw))
        ref = jax.block_until_ready(_reference(x, S, mean, std))
        assert out.shape == ref.shape
        assert out.dtype == jnp.float32
        diff = np.abs(np.asarray(out) - np.asarray(ref))
        # Values landing near an exact .5 pre-round boundary can flip by one
        # uint8 LSB (bf16 hi/lo stage-1 error ~5e-3 pre-round).
        lsb = float(1.0 / 255.0 / min(std))
        assert diff.max() <= lsb + 1e-3, f"max diff {diff.max()} (lsb={lsb})"
        flipped = float((diff > 1e-3).mean())
        assert flipped <= 0.05, f"flipped fraction {flipped}"

    k1, k2, k3 = jax.random.split(key, 3)

    # 1) Small landscape image: single full-width chunk path.
    check(make(k1, (2, 3, 20, 24)), 16)

    # 2) Chunked W reduction with a ragged (partial) last chunk.
    check(make(k2, (1, 3, 160, 200)), 16, max_w_chunk=128)

    # 3) Wide image: crop-band trim skips leading/trailing W chunks entirely;
    #    two images per grid step.
    check(make(k3, (2, 3, 64, 600)), 16, max_w_chunk=128, images_per_step=2)

    print("KERNEL_OK")
</pallas_src>

<mosaic_0001>
module attributes {stable_mosaic.version = 11 : i64} {
  func.func @_transform_kernel(%arg0: i32, %arg1: i32, %arg2: i32, %arg3: memref<1x1x20x24xi8, #tpu.memory_space<vmem>>, %arg4: memref<16x20xbf16, #tpu.memory_space<vmem>>, %arg5: memref<16x20xbf16, #tpu.memory_space<vmem>>, %arg6: memref<24x16xf32, #tpu.memory_space<vmem>>, %arg7: memref<3xf32, #tpu.memory_space<smem>>, %arg8: memref<3xf32, #tpu.memory_space<smem>>, %arg9: memref<1x1x16x16xf32, #tpu.memory_space<vmem>>) attributes {dimension_semantics = [#tpu.dimension_semantics<parallel>, #tpu.dimension_semantics<parallel>, #tpu.dimension_semantics<arbitrary>], iteration_bounds = array<i64: 2, 3, 1>, scalar_prefetch = 0 : i64, scratch_operands = 0 : i64, tpu.core_type = #tpu.core_type<tc>, window_params = [{transform_indices = @transform_0, window_bounds = array<i64: 1, 1, 20, 24>}, {pipeline_mode = #tpu.pipeline_mode<synchronous>, transform_indices = @transform_1, window_bounds = array<i64: 16, 20>}, {pipeline_mode = #tpu.pipeline_mode<synchronous>, transform_indices = @transform_2, window_bounds = array<i64: 16, 20>}, {transform_indices = @transform_3, window_bounds = array<i64: 24, 16>}, {transform_indices = @transform_4, window_bounds = array<i64: 3>}, {transform_indices = @transform_5, window_bounds = array<i64: 3>}, {transform_indices = @transform_6, window_bounds = array<i64: 1, 1, 16, 16>}]} {
    %c0_i32 = arith.constant 0 : i32
    %0 = arith.cmpi eq, %arg2, %c0_i32 : i32
    %1 = arith.extui %0 : i1 to i32
    %c0_i32_0 = arith.constant 0 : i32
    %2 = arith.cmpi ne, %1, %c0_i32_0 : i32
    scf.if %2 {
      %cst_24 = arith.constant 0.000000e+00 : f32
      %28 = vector.broadcast %cst_24 : f32 to vector<1x16x16xf32>
      %c0_25 = arith.constant 0 : index
      %c0_26 = arith.constant 0 : index
      %c0_27 = arith.constant 0 : index
      %c0_28 = arith.constant 0 : index
      %29 = vector.load %arg9[%c0_25, %c0_26, %c0_27, %c0_28] : memref<1x1x16x16xf32, #tpu.memory_space<vmem>>, vector<1x1x16x16xf32>
      %30 = vector.shape_cast %29 : vector<1x1x16x16xf32> to vector<1x16x16xf32>
      %31 = vector.shape_cast %28 : vector<1x16x16xf32> to vector<1x1x16x16xf32>
      tpu.vector_store %arg9[%c0_25, %c0_26, %c0_27, %c0_28], %31 {strides = array<i32>} : memref<1x1x16x16xf32, #tpu.memory_space<vmem>>, vector<1x1x16x16xf32>,
    } else {
    }
    %c0 = arith.constant 0 : index
    %c0_1 = arith.constant 0 : index
    %3 = vector.load %arg4[%c0, %c0_1] : memref<16x20xbf16, #tpu.memory_space<vmem>>, vector<16x20xbf16>
    %c0_2 = arith.constant 0 : index
    %c0_3 = arith.constant 0 : index
    %4 = vector.load %arg5[%c0_2, %c0_3] : memref<16x20xbf16, #tpu.memory_space<vmem>>, vector<16x20xbf16>
    %c0_4 = arith.constant 0 : index
    %c0_5 = arith.constant 0 : index
    %5 = vector.load %arg6[%c0_4, %c0_5] : memref<24x16xf32, #tpu.memory_space<vmem>>, vector<24x16xf32>
    %c0_6 = arith.constant 0 : index
    %c0_7 = arith.constant 0 : index
    %c0_8 = arith.constant 0 : index
    %c0_9 = arith.constant 0 : index
    %6 = vector.load %arg3[%c0_6, %c0_7, %c0_8, %c0_9] : memref<1x1x20x24xi8, #tpu.memory_space<vmem>>, vector<1x1x20x24xi8>
    %7 = vector.shape_cast %6 : vector<1x1x20x24xi8> to vector<20x24xi8>
    %8 = arith.sitofp %7 : vector<20x24xi8> to vector<20x24xf32>
    %cst = arith.constant 0.000000e+00 : f32
    %9 = vector.broadcast %cst : f32 to vector<20x24xf32>
    %10 = arith.cmpf olt, %8, %9 : vector<20x24xf32>
    %cst_10 = arith.constant 2.560000e+02 : f32
    %11 = vector.broadcast %cst_10 : f32 to vector<20x24xf32>
    %12 = arith.addf %8, %11 : vector<20x24xf32>
    %13 = arith.select %10, %12, %8 : vector<20x24xi1>, vector<20x24xf32>
    %14 = arith.truncf %13 : vector<20x24xf32> to vector<20x24xbf16>
    %cst_11 = arith.constant dense<0.000000e+00> : vector<16x24xf32>
    %15 = tpu.matmul %3, %14, %cst_11 {dimension_numbers = #tpu.dot_dimension_numbers<[1], [0], [0], [1], [0, 0, 1, 1], [], []>} : vector<16x20xbf16>, vector<20x24xbf16>, vector<16x24xf32> -> vector<16x24xf32>
    %cst_12 = arith.constant dense<0.000000e+00> : vector<16x24xf32>
    %16 = tpu.matmul %4, %14, %cst_12 {dimension_numbers = #tpu.dot_dimension_numbers<[1], [0], [0], [1], [0, 0, 1, 1], [], []>} : vector<16x20xbf16>, vector<20x24xbf16>, vector<16x24xf32> -> vector<16x24xf32>
    %17 = arith.addf %15, %16 : vector<16x24xf32>
    %c0_13 = arith.constant 0 : index
    %c0_14 = arith.constant 0 : index
    %c0_15 = arith.constant 0 : index
    %c0_16 = arith.constant 0 : index
    %18 = vector.load %arg9[%c0_13, %c0_14, %c0_15, %c0_16] : memref<1x1x16x16xf32, #tpu.memory_space<vmem>>, vector<1x1x16x16xf32>
    %19 = vector.shape_cast %18 : vector<1x1x16x16xf32> to vector<16x16xf32>
    %cst_17 = arith.constant dense<0.000000e+00> : vector<16x16xf32>
    %20 = tpu.matmul %17, %5, %cst_17 {dimension_numbers = #tpu.dot_dimension_numbers<[1], [0], [0], [1], [0, 0, 1, 1], [], []>, precision = #tpu.contract_precision<fp32>} : vector<16x24xf32>, vector<24x16xf32>, vector<16x16xf32> -> vector<16x16xf32>
    %21 = arith.addf %19, %20 : vector<16x16xf32>
    %c0_18 = arith.constant 0 : index
    %c0_19 = arith.constant 0 : index
    %c0_20 = arith.constant 0 : index
    %c0_21 = arith.constant 0 : index
    %22 = vector.load %arg9[%c0_18, %c0_19, %c0_20, %c0_21] : memref<1x1x16x16xf32, #tpu.memory_space<vmem>>, vector<1x1x16x16xf32>
    %23 = vector.shape_cast %22 : vector<1x1x16x16xf32> to vector<16x16xf32>
    %24 = vector.shape_cast %21 : vector<16x16xf32> to vector<1x1x16x16xf32>
    tpu.vector_store %arg9[%c0_18, %c0_19, %c0_20, %c0_21], %24 {strides = array<i32>} : memref<1x1x16x16xf32, #tpu.memory_space<vmem>>, vector<1x1x16x16xf32>,
    %c0_i32_22 = arith.constant 0 : i32
    %25 = arith.cmpi eq, %arg2, %c0_i32_22 : i32
    %26 = arith.extui %25 : i1 to i32
    %c0_i32_23 = arith.constant 0 : i32
    %27 = arith.cmpi ne, %26, %c0_i32_23 : i32
    scf.if %27 {
      %c0_24 = arith.constant 0 : index
      %c0_25 = arith.constant 0 : index
      %c0_26 = arith.constant 0 : index
      %c0_27 = arith.constant 0 : index
      %28 = vector.load %arg9[%c0_24, %c0_25, %c0_26, %c0_27] : memref<1x1x16x16xf32, #tpu.memory_space<vmem>>, vector<1x1x16x16xf32>
      %29 = vector.shape_cast %28 : vector<1x1x16x16xf32> to vector<1x16x16xf32>
      %30 = math.roundeven %29 : vector<1x16x16xf32>
      %cst_28 = arith.constant 0.000000e+00 : f32
      %cst_29 = arith.constant 2.550000e+02 : f32
      %31 = vector.broadcast %cst_28 : f32 to vector<1x16x16xf32>
      %32 = arith.maximumf %31, %30 : vector<1x16x16xf32>
      %33 = vector.broadcast %cst_29 : f32 to vector<1x16x16xf32>
      %34 = arith.minimumf %33, %32 : vector<1x16x16xf32>
      %35 = arith.index_cast %arg1 : i32 to index
      %36 = memref.load %arg7[%35] : memref<3xf32, #tpu.memory_space<smem>>
      %37 = vector.broadcast %36 : f32 to vector<1x16x16xf32>
      %38 = arith.mulf %34, %37 : vector<1x16x16xf32>
      %39 = arith.index_cast %arg1 : i32 to index
      %40 = memref.load %arg8[%39] : memref<3xf32, #tpu.memory_space<smem>>
      %41 = vector.broadcast %40 : f32 to vector<1x16x16xf32>
      %42 = arith.addf %38, %41 : vector<1x16x16xf32>
      %c0_30 = arith.constant 0 : index
      %c0_31 = arith.constant 0 : index
      %c0_32 = arith.constant 0 : index
      %c0_33 = arith.constant 0 : index
      %43 = vector.load %arg9[%c0_30, %c0_31, %c0_32, %c0_33] : memref<1x1x16x16xf32, #tpu.memory_space<vmem>>, vector<1x1x16x16xf32>
      %44 = vector.shape_cast %43 : vector<1x1x16x16xf32> to vector<1x16x16xf32>
      %45 = vector.shape_cast %42 : vector<1x16x16xf32> to vector<1x1x16x16xf32>
      tpu.vector_store %arg9[%c0_30, %c0_31, %c0_32, %c0_33], %45 {strides = array<i32>} : memref<1x1x16x16xf32, #tpu.memory_space<vmem>>, vector<1x1x16x16xf32>,
    } else {
    }
    return
  }
  func.func @transform_0(%arg0: i32, %arg1: i32, %arg2: i32) -> (i32, i32, i32, i32) {
    %c0_i32 = arith.constant 0 : i32
    %0 = arith.addi %arg2, %c0_i32 : i32
    %c0_i32_0 = arith.constant 0 : i32
    %c0_i32_1 = arith.constant 0 : i32
    return %arg0, %arg1, %c0_i32_0, %0 : i32, i32, i32, i32
  }
  func.func @transform_1(%arg0: i32, %arg1: i32, %arg2: i32) -> (i32, i32) {
    %c0_i32 = arith.constant 0 : i32
    %c0_i32_0 = arith.constant 0 : i32
    %c0_i32_1 = arith.constant 0 : i32
    return %c0_i32, %c0_i32_0 : i32, i32
  }
  func.func @transform_2(%arg0: i32, %arg1: i32, %arg2: i32) -> (i32, i32) {
    %c0_i32 = arith.constant 0 : i32
    %c0_i32_0 = arith.constant 0 : i32
    %c0_i32_1 = arith.constant 0 : i32
    return %c0_i32, %c0_i32_0 : i32, i32
  }
  func.func @transform_3(%arg0: i32, %arg1: i32, %arg2: i32) -> (i32, i32) {
    %c0_i32 = arith.constant 0 : i32
    %c0_i32_0 = arith.constant 0 : i32
    return %arg2, %c0_i32 : i32, i32
  }
  func.func @transform_4(%arg0: i32, %arg1: i32, %arg2: i32) -> i32 {
    %c0_i32 = arith.constant 0 : i32
    %c0_i32_0 = arith.constant 0 : i32
    return %c0_i32 : i32
  }
  func.func @transform_5(%arg0: i32, %arg1: i32, %arg2: i32) -> i32 {
    %c0_i32 = arith.constant 0 : i32
    %c0_i32_0 = arith.constant 0 : i32
    return %c0_i32 : i32
  }
  func.func @transform_6(%arg0: i32, %arg1: i32, %arg2: i32) -> (i32, i32, i32, i32) {
    %c0_i32 = arith.constant 0 : i32
    %c0_i32_0 = arith.constant 0 : i32
    %c0_i32_1 = arith.constant 0 : i32
    return %arg0, %arg1, %c0_i32, %c0_i32_0 : i32, i32, i32, i32
  }
}

</mosaic_0001>

<llo_original>
// kernel: tpu_custom_call.1
$region0: #{tpu_custom_call.1}
  #allocation0 [shape = 'u32[]', space=smem, size = 0x4, offset = 0x4, fixed_abs, tag = 'smem constant byte address 0x4 - core index']
  #allocation1 [shape = 'u32[144,128]{1,0:T(1,128)}', space=vmem, size = 0x12000, scoped, tag = 'internal scratch']
  %s0 = inlined_call_operand.vmem [shape: s8[2,3,20,24], index: 0, kind: input, shape index: {}]
  %s1 = inlined_call_operand.hbm [shape: bf16[16,20], index: 1, kind: input, shape index: {}]
  %s2 = inlined_call_operand.hbm [shape: bf16[16,20], index: 2, kind: input, shape index: {}]
  %s3 = inlined_call_operand.vmem [shape: f32[24,16], index: 3, kind: input, shape index: {}]
  %s4 = inlined_call_operand.vmem [shape: f32[3], index: 4, kind: input, shape index: {}]
  %s5 = inlined_call_operand.vmem [shape: f32[3], index: 5, kind: input, shape index: {}]
  %s6 = inlined_call_operand.hbm [shape: f32[2,3,16,16], index: 6, kind: output, shape index: {}]
  %s7 = sld [smem:[#allocation0]]
  $region81: #{tpu_custom_call.1} parent=0
    _
  %s9 = ssub.s32 1, %s7
  %s10 = scalar_select 0, %s9, %s7
  $region1: #{tpu_custom_call.1} parent=0
    #allocation2 [shape = 'u8[4096]{0}', space=vmem, size = 0x1000, scoped, tag = 'input window, operand 1, single buffered']
    #allocation3 [shape = 's32[2]{0}', space=sflag, size = 0x8, scoped, tag = 'scoped memory for tpu_custom_call.1']
    #allocation4 [shape = 's32[2]{0}', space=sflag, size = 0x8, scoped, tag = 'scoped memory for tpu_custom_call.1']
    #allocation5 [shape = 's32[2]{0}', space=sflag, size = 0x8, scoped, tag = 'scoped memory for tpu_custom_call.1']
    #allocation6 [shape = 'u8[4096]{0}', space=vmem, size = 0x1000, scoped, tag = 'input window, operand 2, single buffered']
    #allocation7 [shape = 's32[1]{0}', space=sflag, size = 0x4, scoped, tag = 'scoped memory for tpu_custom_call.1']
    #allocation8 [shape = 'u8[512]{0}', space=smem, size = 0x200, scoped, tag = 'input window, operand 4, single buffered']
    #allocation9 [shape = 'u8[512]{0}', space=smem, size = 0x200, scoped, tag = 'input window, operand 5, single buffered']
    #allocation10 [shape = 's32[1]{0}', space=sflag, size = 0x4, scoped, tag = 'scoped memory for tpu_custom_call.1']
    #allocation11 [shape = 'u8[16384]{0}', space=vmem, size = 0x4000, scoped, tag = 'output window, operand 0']
    %11 = vsyncpa [#allocation3], 0
    %12 = vsyncpa [#allocation7], 0
    %13 = vsyncpa [#allocation5], 0
    %14 = vsyncpa [#allocation10], 0
    %15 = vsyncpa [#allocation4], 0
    %s16 = scalar_lea.sflag [#allocation4], 1
    %17 = vsyncpa %s16, 0
    loop: start=0, step=1, limit=8
    $region2: #{tpu_custom_call.1} parent=1 // loop_pre_header
      _
    $region3: #{tpu_custom_call.1} parent=1 // loop_header
      %s19 = sphi 0, %s23
      %p20 = scmp.ge.s32.totalorder %s19, 8
      %s26 = sphi 0, %s45
      %s27 = sphi 0, %s41
      %s28 = sphi 0, %s37
      %s29 = sphi 0, %s26
      %s30 = sphi 0, %s27
      %s31 = sphi 0, %s28
      %s32 = sphi 0, %s29
      %s33 = sphi 0, %s30
      %s34 = sphi 0, %s31
      %s52 = sphi 0, %s54
      %s55 = sphi 0, %s52
      %s56 = sphi 0, %s55
      %s72 = sphi 0, %s56
      %s76 = sphi 0, %s76
      %s78 = sphi 0, %s76
      %s79 = sphi 0, %s78
      %s93 = sphi 0, %s79
      %s97 = sphi 0, %s97
      %s99 = sphi 0, %s97
      %s100 = sphi 0, %s99
      %s114 = sphi 0, %s100
      %s120 = sphi 0, %s122
      %s123 = sphi 0, %s120
      %s124 = sphi 0, %s123
      %s140 = sphi 0, %s124
      %s144 = sphi 0, %s144
      %s146 = sphi 0, %s144
      %s147 = sphi 0, %s146
      %s161 = sphi 0, %s147
      %s165 = sphi 0, %s165
      %s167 = sphi 0, %s165
      %s168 = sphi 0, %s167
      %s182 = sphi 0, %s168
      %s190 = sphi 0, %s192
      %s193 = sphi 0, %s190
      %s194 = sphi 0, %s193
      %s210 = sphi 0, %s194
    $region4: #{tpu_custom_call.1} parent=1 // loop_header_branch
      %22 = sbr.rel (%p20) target = $region8
    $region5: #{tpu_custom_call.1} parent=1 // loop_body
      %s24 = ssub.s32 %s19, 1
      %s25 = ssub.s32 %s19, 2
      %s35 = sadd.s32 1, %s28
      %p36 = scmp.ge.s32.totalorder %s35, 1
      %s37 = scalar_select %p36, 0, %s35
      %s38 = sadd.s32 1, %s27
      %s39 = scalar_select %p36, %s38, %s27
      %p40 = scmp.ge.s32.totalorder %s39, 3
      %s41 = scalar_select %p40, 0, %s39
      %s42 = sadd.s32 1, %s26
      %s43 = scalar_select %p40, %s42, %s26
      %p44 = scmp.ge.s32.totalorder %s43, 2
      %s45 = scalar_select %p44, 0, %s43
      %s46 = ssub.s32 %s26, %s45
      %s47 = ssub.s32 %s27, %s41
      %s48 = sor.u32 %s46, %s47
      %s49 = ssub.s32 %s28, %s37
      %s50 = sor.u32 %s48, %s49
      %p51 = scmp.eq.s32.totalorder %s50, 0
      %s53 = sadd.s32 %s52, 1
      %s54 = scalar_select %p51, %s52, %s53
      %p57 = pneg %p51
      %p58 = scmp.eq.s32.totalorder %s19, 5
      %p59 = por %p57, %p58
      %p60 = scmp.ne.s32.totalorder %s52, %s55
      %p61 = scmp.eq.s32.totalorder %s19, 0
      %p62 = por %p60, %p61
      %p63 = scmp.ne.s32.totalorder %s52, %s55
      %p64 = scmp.eq.s32.totalorder %s24, 5
      %p65 = por %p63, %p64
      %p66 = scmp.ne.s32.totalorder %s55, %s56
      %p67 = scmp.eq.s32.totalorder %s24, 0
      %p68 = por %p66, %p67
      %p69 = scmp.ne.s32.totalorder %s55, %s56
      %p70 = scmp.eq.s32.totalorder %s25, 5
      %p71 = por %p69, %p70
      %p73 = scmp.ne.s32.totalorder %s56, %s72
      %p74 = scmp.eq.s32.totalorder %s25, 0
      %p75 = por %p73, %p74
      %s77 = sadd.s32 %s76, 1
      %p80 = scmp.eq.s32.totalorder %s19, 5
      %p81 = scmp.ne.s32.totalorder %s76, %s78
      %p82 = scmp.eq.s32.totalorder %s19, 0
      %p83 = por %p81, %p82
      %p84 = scmp.ne.s32.totalorder %s76, %s78
      %p85 = scmp.eq.s32.totalorder %s24, 5
      %p86 = por %p84, %p85
      %p87 = scmp.ne.s32.totalorder %s78, %s79
      %p88 = scmp.eq.s32.totalorder %s24, 0
      %p89 = por %p87, %p88
      %p90 = scmp.ne.s32.totalorder %s78, %s79
      %p91 = scmp.eq.s32.totalorder %s25, 5
      %p92 = por %p90, %p91
      %p94 = scmp.ne.s32.totalorder %s79, %s93
      %p95 = scmp.eq.s32.totalorder %s25, 0
      %p96 = por %p94, %p95
      %s98 = sadd.s32 %s97, 1
      %p101 = scmp.eq.s32.totalorder %s19, 5
      %p102 = scmp.ne.s32.totalorder %s97, %s99
      %p103 = scmp.eq.s32.totalorder %s19, 0
      %p104 = por %p102, %p103
      %p105 = scmp.ne.s32.totalorder %s97, %s99
      %p106 = scmp.eq.s32.totalorder %s24, 5
      %p107 = por %p105, %p106
      %p108 = scmp.ne.s32.totalorder %s99, %s100
      %p109 = scmp.eq.s32.totalorder %s24, 0
      %p110 = por %p108, %p109
      %p111 = scmp.ne.s32.totalorder %s99, %s100
      %p112 = scmp.eq.s32.totalorder %s25, 5
      %p113 = por %p111, %p112
      %p115 = scmp.ne.s32.totalorder %s100, %s114
      %p116 = scmp.eq.s32.totalorder %s25, 0
      %p117 = por %p115, %p116
      %s118 = ssub.s32 %s28, %s37
      %p119 = scmp.eq.s32.totalorder %s118, 0
      %s121 = sadd.s32 %s120, 1
      %s122 = scalar_select %p119, %s120, %s121
      %p125 = pneg %p119
      %p126 = scmp.eq.s32.totalorder %s19, 5
      %p127 = por %p125, %p126
      %p128 = scmp.ne.s32.totalorder %s120, %s123
      %p129 = scmp.eq.s32.totalorder %s19, 0
      %p130 = por %p128, %p129
      %p131 = scmp.ne.s32.totalorder %s120, %s123
      %p132 = scmp.eq.s32.totalorder %s24, 5
      %p133 = por %p131, %p132
      %p134 = scmp.ne.s32.totalorder %s123, %s124
      %p135 = scmp.eq.s32.totalorder %s24, 0
      %p136 = por %p134, %p135
      %p137 = scmp.ne.s32.totalorder %s123, %s124
      %p138 = scmp.eq.s32.totalorder %s25, 5
      %p139 = por %p137, %p138
      %p141 = scmp.ne.s32.totalorder %s124, %s140
      %p142 = scmp.eq.s32.totalorder %s25, 0
      %p143 = por %p141, %p142
      %s145 = sadd.s32 %s144, 1
      %p148 = scmp.eq.s32.totalorder %s19, 5
      %p149 = scmp.ne.s32.totalorder %s144, %s146
      %p150 = scmp.eq.s32.totalorder %s19, 0
      %p151 = por %p149, %p150
      %p152 = scmp.ne.s32.totalorder %s144, %s146
      %p153 = scmp.eq.s32.totalorder %s24, 5
      %p154 = por %p152, %p153
      %p155 = scmp.ne.s32.totalorder %s146, %s147
      %p156 = scmp.eq.s32.totalorder %s24, 0
      %p157 = por %p155, %p156
      %p158 = scmp.ne.s32.totalorder %s146, %s147
      %p159 = scmp.eq.s32.totalorder %s25, 5
      %p160 = por %p158, %p159
      %p162 = scmp.ne.s32.totalorder %s147, %s161
      %p163 = scmp.eq.s32.totalorder %s25, 0
      %p164 = por %p162, %p163
      %s166 = sadd.s32 %s165, 1
      %p169 = scmp.eq.s32.totalorder %s19, 5
      %p170 = scmp.ne.s32.totalorder %s165, %s167
      %p171 = scmp.eq.s32.totalorder %s19, 0
      %p172 = por %p170, %p171
      %p173 = scmp.ne.s32.totalorder %s165, %s167
      %p174 = scmp.eq.s32.totalorder %s24, 5
      %p175 = por %p173, %p174
      %p176 = scmp.ne.s32.totalorder %s167, %s168
      %p177 = scmp.eq.s32.totalorder %s24, 0
      %p178 = por %p176, %p177
      %p179 = scmp.ne.s32.totalorder %s167, %s168
      %p180 = scmp.eq.s32.totalorder %s25, 5
      %p181 = por %p179, %p180
      %p183 = scmp.ne.s32.totalorder %s168, %s182
      %p184 = scmp.eq.s32.totalorder %s25, 0
      %p185 = por %p183, %p184
      %s186 = ssub.s32 %s26, %s45
      %s187 = ssub.s32 %s27, %s41
      %s188 = sor.u32 %s186, %s187
      %p189 = scmp.eq.s32.totalorder %s188, 0
      %s191 = sadd.s32 %s190, 1
      %s192 = scalar_select %p189, %s190, %s191
      %p195 = pneg %p189
      %p196 = scmp.eq.s32.totalorder %s19, 5
      %p197 = por %p195, %p196
      %p198 = scmp.ne.s32.totalorder %s190, %s193
      %p199 = scmp.eq.s32.totalorder %s19, 0
      %p200 = por %p198, %p199
      %p201 = scmp.ne.s32.totalorder %s190, %s193
      %p202 = scmp.eq.s32.totalorder %s24, 5
      %p203 = por %p201, %p202
      %p204 = scmp.ne.s32.totalorder %s193, %s194
      %p205 = scmp.eq.s32.totalorder %s24, 0
      %p206 = por %p204, %p205
      %p207 = scmp.ne.s32.totalorder %s193, %s194
      %p208 = scmp.eq.s32.totalorder %s25, 5
      %p209 = por %p207, %p208
      %p211 = scmp.ne.s32.totalorder %s194, %s210
      %p212 = scmp.eq.s32.totalorder %s25, 0
      %p213 = por %p211, %p212
      %p214 = scmp.le.s32.totalorder 1, %s19
      %p215 = scmp.lt.s32.totalorder %s19, 7
      %p216 = pnand %p214, %p215
      %p217 = pneg %p216
      // Predicated region
      $region9: #{tpu_custom_call.1} parent=5 // pred_check
        _
      $region10: #{tpu_custom_call.1} parent=5 // pred_check_branch
        %219 = sbr.rel (%p216) target = $region12
      $region11: #{tpu_custom_call.1} parent=5 // pred_region
        %s220 = ssub.s32 %s19, 1
        // Predicated region
        $region13: #{tpu_custom_call.1} parent=11 // pred_check
          %p221 = pneg %p89
        $region14: #{tpu_custom_call.1} parent=11 // pred_check_branch
          %223 = sbr.rel (%p221) target = $region16
        $region15: #{tpu_custom_call.1} parent=11 // pred_region
          %s225 = ssub.s32 128, 128
          %226 = vsyncadd [#allocation3], %s225
          %s227 = sshll.u32 [#allocation2], 4
          %s228 = int_to_ptr.vmem [resolvable:$true] %s227
          %233 = dma.hbm_to_vmem [thread:$0]  %s1, 128, %s228, [#allocation3], 64, 64, 4
        $region16: #{tpu_custom_call.1} parent=11 // pred_fallthru
          _
        // Predicated region
        $region17: #{tpu_custom_call.1} parent=11 // pred_check
          %p234 = pneg %p110
        $region18: #{tpu_custom_call.1} parent=11 // pred_check_branch
          %236 = sbr.rel (%p234) target = $region20
        $region19: #{tpu_custom_call.1} parent=11 // pred_region
          %s238 = ssub.s32 128, 128
          %239 = vsyncadd [#allocation7], %s238
          %s240 = sshll.u32 [#allocation6], 4
          %s241 = int_to_ptr.vmem [resolvable:$true] %s240
          %246 = dma.hbm_to_vmem [thread:$0]  %s2, 128, %s241, [#allocation7], 64, 64, 4
        $region20: #{tpu_custom_call.1} parent=11 // pred_fallthru
          _
        // Predicated region
        $region21: #{tpu_custom_call.1} parent=11 // pred_check
          %p247 = pneg %p136
        $region22: #{tpu_custom_call.1} parent=11 // pred_check_branch
          %249 = sbr.rel (%p247) target = $region24
        $region23: #{tpu_custom_call.1} parent=11 // pred_region
          %s250 = smul.u32 3, %s31
          %p251 = scmp.lt.s32.totalorder %s250, 2
          %s252 = scalar_select %p251, %s250, 2
          %s253 = smul.addr %s252, 8
          %s254 = scalar_lea.vmem %s3, %s253
          %s255 = smul.u32 3, %s31
        $region24: #{tpu_custom_call.1} parent=11 // pred_fallthru
          _
        // Predicated region
        $region25: #{tpu_custom_call.1} parent=11 // pred_check
          %p256 = pneg %p157
        $region26: #{tpu_custom_call.1} parent=11 // pred_check_branch
          %258 = sbr.rel (%p256) target = $region28
        $region27: #{tpu_custom_call.1} parent=11 // pred_region
          %s260 = ssub.s32 16, 16
          %261 = vsyncadd [#allocation5], %s260
          %s263 = sshll.u32 %s4, 4
          %s264 = int_to_ptr.vmem [resolvable:$true] %s263
          %266 = dma.vmem_to_smem %s264, 16, [#allocation8], [#allocation5]
        $region28: #{tpu_custom_call.1} parent=11 // pred_fallthru
          _
        // Predicated region
        $region29: #{tpu_custom_call.1} parent=11 // pred_check
          %p267 = pneg %p178
        $region30: #{tpu_custom_call.1} parent=11 // pred_check_branch
          %269 = sbr.rel (%p267) target = $region32
        $region31: #{tpu_custom_call.1} parent=11 // pred_region
          %s271 = ssub.s32 16, 16
          %272 = vsyncadd [#allocation10], %s271
          %s274 = sshll.u32 %s5, 4
          %s275 = int_to_ptr.vmem [resolvable:$true] %s274
          %277 = dma.vmem_to_smem %s275, 16, [#allocation9], [#allocation10]
        $region32: #{tpu_custom_call.1} parent=11 // pred_fallthru
          _
      $region12: #{tpu_custom_call.1} parent=5 // pred_fallthru
        _
      %p278 = scmp.lt.s32.totalorder %s19, 6
      // Predicated region
      $region33: #{tpu_custom_call.1} parent=5 // pred_check
        %p279 = pneg %p278
      $region34: #{tpu_custom_call.1} parent=5 // pred_check_branch
        %281 = sbr.rel (%p279) target = $region36
      $region35: #{tpu_custom_call.1} parent=5 // pred_region
        // Predicated region
        $region37: #{tpu_custom_call.1} parent=35 // pred_check
          %p282 = pneg %p62
        $region38: #{tpu_custom_call.1} parent=35 // pred_check_branch
          %284 = sbr.rel (%p282) target = $region40
        $region39: #{tpu_custom_call.1} parent=35 // pred_region
          %p285 = scmp.lt.s32.totalorder %s26, 1
          %s286 = scalar_select %p285, %s26, 1
          %p287 = scmp.lt.s32.totalorder %s27, 2
          %s288 = scalar_select %p287, %s27, 2
          %p289 = scmp.lt.s32.totalorder %s28, 0
          %s290 = scalar_select %p289, %s28, 0
          %s291 = smul.addr %s288, 3
          %s292 = sadd.s32 %s290, %s291
          %s293 = smul.addr %s286, 9
          %s294 = sadd.s32 %s292, %s293
          %s295 = smul.addr %s294, 2
          %s296 = scalar_lea.vmem %s0, %s295
        $region40: #{tpu_custom_call.1} parent=35 // pred_fallthru
          _
      $region36: #{tpu_custom_call.1} parent=5 // pred_fallthru
        _
      %p297 = scmp.le.s32.totalorder 1, %s19
      %p298 = scmp.lt.s32.totalorder %s19, 7
      %p299 = pnand %p297, %p298
      %p300 = pneg %p299
      // Predicated region
      $region41: #{tpu_custom_call.1} parent=5 // pred_check
        _
      $region42: #{tpu_custom_call.1} parent=5 // pred_check_branch
        %302 = sbr.rel (%p299) target = $region44
      $region43: #{tpu_custom_call.1} parent=5 // pred_region
        %s303 = ssub.s32 %s19, 1
        // Predicated region
        $region45: #{tpu_custom_call.1} parent=43 // pred_check
          %p304 = pneg %p89
        $region46: #{tpu_custom_call.1} parent=43 // pred_check_branch
          %306 = sbr.rel (%p304) target = $region48
        $region47: #{tpu_custom_call.1} parent=43 // pred_region
          %307 = dma.done [#allocation3], 128
        $region48: #{tpu_custom_call.1} parent=43 // pred_fallthru
          _
        // Predicated region
        $region49: #{tpu_custom_call.1} parent=43 // pred_check
          %p308 = pneg %p110
        $region50: #{tpu_custom_call.1} parent=43 // pred_check_branch
          %310 = sbr.rel (%p308) target = $region52
        $region51: #{tpu_custom_call.1} parent=43 // pred_region
          %311 = dma.done [#allocation7], 128
        $region52: #{tpu_custom_call.1} parent=43 // pred_fallthru
          _
        // Predicated region
        $region53: #{tpu_custom_call.1} parent=43 // pred_check
          %p312 = pneg %p157
        $region54: #{tpu_custom_call.1} parent=43 // pred_check_branch
          %314 = sbr.rel (%p312) target = $region56
        $region55: #{tpu_custom_call.1} parent=43 // pred_region
          %315 = dma.done [#allocation5], 16
        $region56: #{tpu_custom_call.1} parent=43 // pred_fallthru
          _
        // Predicated region
        $region57: #{tpu_custom_call.1} parent=43 // pred_check
          %p316 = pneg %p178
        $region58: #{tpu_custom_call.1} parent=43 // pred_check_branch
          %318 = sbr.rel (%p316) target = $region60
        $region59: #{tpu_custom_call.1} parent=43 // pred_region
          %319 = dma.done [#allocation10], 16
        $region60: #{tpu_custom_call.1} parent=43 // pred_fallthru
          _
        %320 = sfence
        %p321 = scmp.lt.s32.totalorder %s29, 1
        %s322 = scalar_select %p321, %s29, 1
        %p323 = scmp.lt.s32.totalorder %s30, 2
        %s324 = scalar_select %p323, %s30, 2
        %p325 = scmp.lt.s32.totalorder %s31, 0
        %s326 = scalar_select %p325, %s31, 0
        %s327 = smul.addr %s324, 3
        %s328 = sadd.s32 %s326, %s327
        %s329 = smul.addr %s322, 9
        %s330 = sadd.s32 %s328, %s329
        %s331 = smul.addr %s330, 2
        %s332 = scalar_lea.vmem %s0, %s331
        %p333 = pneg %p68
        %p334 = pneg %p65
        %p335 = pneg %p89
        %p336 = pneg %p86
        %p337 = pneg %p110
        %p338 = pneg %p107
        %s339 = smul.u32 3, %s31
        %p340 = scmp.lt.s32.totalorder %s339, 2
        %s341 = scalar_select %p340, %s339, 2
        %s342 = smul.addr %s341, 8
        %s343 = scalar_lea.vmem %s3, %s342
        %p344 = pneg %p136
        %p345 = pneg %p133
        %p346 = pneg %p157
        %p347 = pneg %p154
        %p348 = pneg %p178
        %p349 = pneg %p175
        %p350 = pneg %p206
        %p351 = pneg %p203
        %s352 = sand.u32 %s193, 1
        %s353 = scalar_lea.sflag [#allocation4], %s352
        %s354 = sand.u32 %s193, 1
        %s355 = smul.addr %s354, 16
        %s356 = scalar_lea.vmem [#allocation11], %s355
        %p357 = scmp.lt.s32.totalorder %s29, 1
        %s358 = scalar_select %p357, %s29, 1
        %p359 = scmp.lt.s32.totalorder %s30, 2
        %s360 = scalar_select %p359, %s30, 2
        %p361 = scmp.lt.s32.totalorder %s31, 0
        %s362 = scalar_select %p361, %s31, 0
        %s363 = smul.addr %s360, 3
        %s364 = sadd.s32 %s362, %s363
        %s365 = smul.addr %s358, 9
        %s366 = sadd.s32 %s364, %s365
        %s367 = smul.addr %s366, 2
        %s368 = scalar_lea.vmem %s0, %s367
        %s369 = smul.u32 3, %s31
        %p370 = scmp.lt.s32.totalorder %s369, 2
        %s371 = scalar_select %p370, %s369, 2
        %s372 = smul.addr %s371, 8
        %s373 = scalar_lea.vmem %s3, %s372
        %s374 = smul.u32 3, %s31
        %p376 = scmp.eq.s32.totalorder %s31, 0
        // Predicated region
        $region61: #{tpu_custom_call.1} parent=43 // pred_check
          %p377 = pneg %p376
        $region62: #{tpu_custom_call.1} parent=43 // pred_check_branch
          %379 = sbr.rel (%p377) target = $region64
        $region63: #{tpu_custom_call.1} parent=43 // pred_region
          %vm380 = vcmask 130048
          %381 = vst.msk [vmem:[%s356] sm:$0xff] %vm380, 0.0
          %382 = vst.msk [vmem:[%s356 + $0x8] sm:$0xff] %vm380, 0.0
        $region64: #{tpu_custom_call.1} parent=43 // pred_fallthru
          _
        %v383 = vld [vmem:[#allocation2] sm:$0xf]
        %v384 = vld [vmem:[#allocation2 + $0x4] sm:$0xf]
        %v385 = vld [vmem:[#allocation6] sm:$0xf]
        %v386 = vld [vmem:[#allocation6 + $0x4] sm:$0xf]
        %v387 = vld [vmem:[%s373] sm:$0xff]
        %v388 = vld [vmem:[%s373 + $0x8] sm:$0xff]
        %v389 = vld [vmem:[%s373 + $0x10] sm:$0xff]
        %v390 = vld [vmem:[%s368] sm:$0x3]
        %v391 = vld [vmem:[%s368 + $0x2] sm:$0x3]
        %v392 = vld [vmem:[%s368 + $0x4] sm:$0x1]
        %v393 = vunpack.c.0.s8 %v390
        %v394 = vunpack.c.0.s8 %v391
        %v395 = vunpack.c.0.s8 %v392
        %v396 = vcvt.s32.f32 %v393
        %v397 = vcvt.s32.f32 %v394
        %v398 = vcvt.s32.f32 %v395
        %vm399 = vcmp.lt.f32.partialorder %v396, 0.0
        %vm400 = vcmp.lt.f32.partialorder %v397, 0.0
        %vm401 = vcmp.lt.f32.partialorder %v398, 0.0
        %v402 = vadd.f32 %v396, 256.0
        %v403 = vadd.f32 %v397, 256.0
        %v404 = vadd.f32 %v398, 256.0
        %v405 = vsel %vm399, %v402, %v396
        %v406 = vsel %vm400, %v403, %v397
        %v407 = vsel %vm401, %v404, %v398
        %v408 = vpack.c.bf16 %v406, %v405
        %v409 = vpack.c.bf16 %v407, %v407
        %v412 = vunpack.c.l.b16 %v385
        %v413 = vunpack.c.l.b16 %v386
        %v414 = vpack.c.b16 %v413, %v412
        %vm415 = vcmask 162816
        %v417 = vsel %vm415, %v414, 0
        %vm419 = vcmask 1041408
        %v421 = vsel %vm419, %v409, 0
        %423 = vmatprep.subr.bf16.mxu0 0
        %424 = vmatpush1.bf16.msra.mxu0 0
        %425 = vmatprep.subr.bf16.mxu0 0
        %426 = vmatpush1.bf16.msra.mxu0 0
        %427 = vmatprep.subr.bf16.mxu0 0
        %428 = vmatpush1.bf16.msra.mxu0 0
        %429 = vmatprep.subr.bf16.mxu0 0
        %430 = vmatpush1.bf16.msra.mxu0 0
        %431 = vmatprep.subr.bf16.mxu0 0
        %432 = vmatpush1.bf16.msra.mxu0 0
        %433 = vmatprep.subr.bf16.mxu0 0
        %434 = vmatpush1.bf16.msra.mxu0 0
        %435 = vmatprep.subr.bf16.mxu0 0
        %436 = vmatpush1.bf16.msra.mxu0 %v421
        %437 = vmatprep.subr.bf16.mxu0 0
        %438 = vmatpush1.bf16.msra.mxu0 %v408
        %439 = vmatprep.subr.bf16.mxu0 0
        %440 = vmatpush2.bf16.msra.mxu0 0
        %441 = vmatprep.subr.bf16.mxu0 0
        %442 = vmatpush2.bf16.msra.mxu0 0
        %443 = vmatprep.subr.bf16.mxu0 0
        %444 = vmatpush2.bf16.msra.mxu0 0
        %445 = vmatprep.subr.bf16.mxu0 0
        %446 = vmatpush2.bf16.msra.mxu0 0
        %447 = vmatprep.subr.bf16.mxu0 0
        %448 = vmatpush2.bf16.msra.mxu0 0
        %449 = vmatprep.subr.bf16.mxu0 0
        %450 = vmatpush2.bf16.msra.mxu0 0
        %451 = vmatprep.subr.bf16.mxu0 0
        %452 = vmatpush2.bf16.msra.mxu0 0
        %453 = vmatprep.subr.bf16.mxu0 0
        %454 = vmatpush2.bf16.msra.mxu0 0
        %455 = vmatprep.mubr.bf16.mxu0 0
        %456 = vmatmul.mubr.bf16.gmra.mxu0 %v417
        %v457 = vpop.f32.mrf.mxu0
        %v458 = vadd.f32 0.0, %v457
        %v459 = vpop.f32.mrf.mxu0
        %v460 = vpop.f32.mrf.mxu0
        %v461 = vadd.f32 0.0, %v460
        %v462 = vpop.f32.mrf.mxu0
        %463 = vdwg.mxu0
        %v466 = vunpack.c.l.b16 %v383
        %v467 = vunpack.c.l.b16 %v384
        %v468 = vpack.c.b16 %v467, %v466
        %v470 = vsel %vm415, %v468, 0
        %472 = vmatprep.subr.bf16.mxu0 0
        %473 = vmatpush1.bf16.msra.mxu0 0
        %474 = vmatprep.subr.bf16.mxu0 0
        %475 = vmatpush1.bf16.msra.mxu0 0
        %476 = vmatprep.subr.bf16.mxu0 0
        %477 = vmatpush1.bf16.msra.mxu0 0
        %478 = vmatprep.subr.bf16.mxu0 0
        %479 = vmatpush1.bf16.msra.mxu0 0
        %480 = vmatprep.subr.bf16.mxu0 0
        %481 = vmatpush1.bf16.msra.mxu0 0
        %482 = vmatprep.subr.bf16.mxu0 0
        %483 = vmatpush1.bf16.msra.mxu0 0
        %484 = vmatprep.subr.bf16.mxu0 0
        %485 = vmatpush1.bf16.msra.mxu0 %v421
        %486 = vmatprep.subr.bf16.mxu0 0
        %487 = vmatpush1.bf16.msra.mxu0 %v408
        %488 = vmatprep.subr.bf16.mxu0 0
        %489 = vmatpush2.bf16.msra.mxu0 0
        %490 = vmatprep.subr.bf16.mxu0 0
        %491 = vmatpush2.bf16.msra.mxu0 0
        %492 = vmatprep.subr.bf16.mxu0 0
        %493 = vmatpush2.bf16.msra.mxu0 0
        %494 = vmatprep.subr.bf16.mxu0 0
        %495 = vmatpush2.bf16.msra.mxu0 0
        %496 = vmatprep.subr.bf16.mxu0 0
        %497 = vmatpush2.bf16.msra.mxu0 0
        %498 = vmatprep.subr.bf16.mxu0 0
        %499 = vmatpush2.bf16.msra.mxu0 0
        %500 = vmatprep.subr.bf16.mxu0 0
        %501 = vmatpush2.bf16.msra.mxu0 0
        %502 = vmatprep.subr.bf16.mxu0 0
        %503 = vmatpush2.bf16.msra.mxu0 0
        %504 = vmatprep.mubr.bf16.mxu0 0
        %505 = vmatmul.mubr.bf16.gmra.mxu0 %v470
        %v506 = vpop.f32.mrf.mxu0
        %v507 = vadd.f32 %v458, %v506
        %v508 = vpop.f32.mrf.mxu0
        %v509 = vpop.f32.mrf.mxu0
        %v510 = vadd.f32 %v461, %v509
        %v511 = vpop.f32.mrf.mxu0
        %512 = vdwg.mxu0
        %v513 = vld [vmem:[%s356] sm:$0xff]
        %v514 = vld [vmem:[%s356 + $0x8] sm:$0xff]
        %vm515 = vcmask 195584
        %v517 = vsel %vm515, %v507, 0
        %v520 = vsel %vm515, %v510, 0
        %522 = vmatprep.subr.mxu0 0.0
        %523 = vmatpush1.msra.mxu0 0.0
        %524 = vmatprep.subr.mxu0 0.0
        %525 = vmatpush1.msra.mxu0 0.0
        %526 = vmatprep.subr.mxu0 0.0
        %527 = vmatpush1.msra.mxu0 0.0
        %528 = vmatprep.subr.mxu0 0.0
        %529 = vmatpush1.msra.mxu0 0.0
        %530 = vmatprep.subr.mxu0 0.0
        %531 = vmatpush1.msra.mxu0 0.0
        %532 = vmatprep.subr.mxu0 0.0
        %533 = vmatpush1.msra.mxu0 0.0
        %534 = vmatprep.subr.mxu0 0.0
        %535 = vmatpush1.msra.mxu0 0.0
        %536 = vmatprep.subr.mxu0 0.0
        %537 = vmatpush1.msra.mxu0 0.0
        %538 = vmatprep.subr.mxu0 0.0
        %539 = vmatpush1.msra.mxu0 0.0
        %540 = vmatprep.subr.mxu0 0.0
        %541 = vmatpush1.msra.mxu0 0.0
        %542 = vmatprep.subr.mxu0 0.0
        %543 = vmatpush1.msra.mxu0 0.0
        %544 = vmatprep.subr.mxu0 0.0
        %545 = vmatpush1.msra.mxu0 0.0
        %546 = vmatprep.subr.mxu0 0.0
        %547 = vmatpush1.msra.mxu0 0.0
        %548 = vmatprep.subr.mxu0 0.0
        %v549 = vand.u32 %v389, 4294901760
        %550 = vmatpush1.msra.mxu0 %v549
        %551 = vmatprep.subr.mxu0 0.0
        %v552 = vand.u32 %v388, 4294901760
        %553 = vmatpush1.msra.mxu0 %v552
        %554 = vmatprep.subr.mxu0 0.0
        %v555 = vand.u32 %v387, 4294901760
        %556 = vmatpush1.msra.mxu0 %v555
        %557 = vmatprep.subr.mxu0 0.0
        %558 = vmatpush2.msra.mxu0 0.0
        %559 = vmatprep.subr.mxu0 0.0
        %560 = vmatpush2.msra.mxu0 0.0
        %561 = vmatprep.subr.mxu0 0.0
        %562 = vmatpush2.msra.mxu0 0.0
        %563 = vmatprep.subr.mxu0 0.0
        %564 = vmatpush2.msra.mxu0 0.0
        %565 = vmatprep.subr.mxu0 0.0
        %566 = vmatpush2.msra.mxu0 0.0
        %567 = vmatprep.subr.mxu0 0.0
        %568 = vmatpush2.msra.mxu0 0.0
        %569 = vmatprep.subr.mxu0 0.0
        %570 = vmatpush2.msra.mxu0 0.0
        %571 = vmatprep.subr.mxu0 0.0
        %572 = vmatpush2.msra.mxu0 0.0
        %573 = vmatprep.subr.mxu0 0.0
        %574 = vmatpush2.msra.mxu0 0.0
        %575 = vmatprep.subr.mxu0 0.0
        %576 = vmatpush2.msra.mxu0 0.0
        %577 = vmatprep.subr.mxu0 0.0
        %578 = vmatpush2.msra.mxu0 0.0
        %579 = vmatprep.subr.mxu0 0.0
        %580 = vmatpush2.msra.mxu0 0.0
        %581 = vmatprep.subr.mxu0 0.0
        %582 = vmatpush2.msra.mxu0 0.0
        %583 = vmatprep.subr.mxu0 0.0
        %584 = vmatpush2.msra.mxu0 0.0
        %585 = vmatprep.subr.mxu0 0.0
        %586 = vmatpush2.msra.mxu0 0.0
        %587 = vmatprep.subr.mxu0 0.0
        %588 = vmatpush2.msra.mxu0 0.0
        %589 = vmatprep.mubr.f32.mxu0 0.0
        %v590 = vand.u32 %v517, 4294901760
        %v591 = vsub.f32 %v517, %v590
        %v592 = vand.u32 %v591, 4294901760
        %v593 = vsub.f32 %v591, %v592
        %v594 = vand.u32 %v593, 4294901760
        %595 = vmatmul.mubr.f32.gmra.mxu0 %v594
        %v596 = vpop.f32.mrf.mxu0
        %v597 = vadd.f32 0.0, %v596
        %v598 = vpop.f32.mrf.mxu0
        %599 = vmatprep.mubr.f32.mxu0 0.0
        %v600 = vand.u32 %v520, 4294901760
        %v601 = vsub.f32 %v520, %v600
        %v602 = vand.u32 %v601, 4294901760
        %v603 = vsub.f32 %v601, %v602
        %v604 = vand.u32 %v603, 4294901760
        %605 = vmatmul.mubr.f32.gmra.mxu0 %v604
        %v606 = vpop.f32.mrf.mxu0
        %v607 = vadd.f32 0.0, %v606
        %v608 = vpop.f32.mrf.mxu0
        %609 = vdwg.mxu0
        %610 = vmatprep.subr.mxu0 0.0
        %611 = vmatpush1.msra.mxu0 0.0
        %612 = vmatprep.subr.mxu0 0.0
        %613 = vmatpush1.msra.mxu0 0.0
        %614 = vmatprep.subr.mxu0 0.0
        %615 = vmatpush1.msra.mxu0 0.0
        %616 = vmatprep.subr.mxu0 0.0
        %617 = vmatpush1.msra.mxu0 0.0
        %618 = vmatprep.subr.mxu0 0.0
        %619 = vmatpush1.msra.mxu0 0.0
        %620 = vmatprep.subr.mxu0 0.0
        %621 = vmatpush1.msra.mxu0 0.0
        %622 = vmatprep.subr.mxu0 0.0
        %623 = vmatpush1.msra.mxu0 0.0
        %624 = vmatprep.subr.mxu0 0.0
        %625 = vmatpush1.msra.mxu0 0.0
        %626 = vmatprep.subr.mxu0 0.0
        %627 = vmatpush1.msra.mxu0 0.0
        %628 = vmatprep.subr.mxu0 0.0
        %629 = vmatpush1.msra.mxu0 0.0
        %630 = vmatprep.subr.mxu0 0.0
        %631 = vmatpush1.msra.mxu0 0.0
        %632 = vmatprep.subr.mxu0 0.0
        %633 = vmatpush1.msra.mxu0 0.0
        %634 = vmatprep.subr.mxu0 0.0
        %635 = vmatpush1.msra.mxu0 0.0
        %636 = vmatprep.subr.mxu0 0.0
        %v637 = vand.u32 %v389, 4294901760
        %v638 = vsub.f32 %v389, %v637
        %v639 = vand.u32 %v638, 4294901760
        %v640 = vsub.f32 %v638, %v639
        %v641 = vand.u32 %v640, 4294901760
        %642 = vmatpush1.msra.mxu0 %v641
        %643 = vmatprep.subr.mxu0 0.0
        %v644 = vand.u32 %v388, 4294901760
        %v645 = vsub.f32 %v388, %v644
        %v646 = vand.u32 %v645, 4294901760
        %v647 = vsub.f32 %v645, %v646
        %v648 = vand.u32 %v647, 4294901760
        %649 = vmatpush1.msra.mxu0 %v648
        %650 = vmatprep.subr.mxu0 0.0
        %v651 = vand.u32 %v387, 4294901760
        %v652 = vsub.f32 %v387, %v651
        %v653 = vand.u32 %v652, 4294901760
        %v654 = vsub.f32 %v652, %v653
        %v655 = vand.u32 %v654, 4294901760
        %656 = vmatpush1.msra.mxu0 %v655
        %657 = vmatprep.subr.mxu0 0.0
        %658 = vmatpush2.msra.mxu0 0.0
        %659 = vmatprep.subr.mxu0 0.0
        %660 = vmatpush2.msra.mxu0 0.0
        %661 = vmatprep.subr.mxu0 0.0
        %662 = vmatpush2.msra.mxu0 0.0
        %663 = vmatprep.subr.mxu0 0.0
        %664 = vmatpush2.msra.mxu0 0.0
        %665 = vmatprep.subr.mxu0 0.0
        %666 = vmatpush2.msra.mxu0 0.0
        %667 = vmatprep.subr.mxu0 0.0
        %668 = vmatpush2.msra.mxu0 0.0
        %669 = vmatprep.subr.mxu0 0.0
        %670 = vmatpush2.msra.mxu0 0.0
        %671 = vmatprep.subr.mxu0 0.0
        %672 = vmatpush2.msra.mxu0 0.0
        %673 = vmatprep.subr.mxu0 0.0
        %674 = vmatpush2.msra.mxu0 0.0
        %675 = vmatprep.subr.mxu0 0.0
        %676 = vmatpush2.msra.mxu0 0.0
        %677 = vmatprep.subr.mxu0 0.0
        %678 = vmatpush2.msra.mxu0 0.0
        %679 = vmatprep.subr.mxu0 0.0
        %680 = vmatpush2.msra.mxu0 0.0
        %681 = vmatprep.subr.mxu0 0.0
        %682 = vmatpush2.msra.mxu0 0.0
        %683 = vmatprep.subr.mxu0 0.0
        %684 = vmatpush2.msra.mxu0 0.0
        %685 = vmatprep.subr.mxu0 0.0
        %686 = vmatpush2.msra.mxu0 0.0
        %687 = vmatprep.subr.mxu0 0.0
        %688 = vmatpush2.msra.mxu0 0.0
        %689 = vmatprep.mubr.f32.mxu0 0.0
        %v690 = vand.u32 %v517, 4294901760
        %691 = vmatmul.mubr.f32.gmra.mxu0 %v690
        %v692 = vpop.f32.mrf.mxu0
        %v693 = vadd.f32 %v597, %v692
        %v694 = vpop.f32.mrf.mxu0
        %695 = vmatprep.mubr.f32.mxu0 0.0
        %v696 = vand.u32 %v520, 4294901760
        %697 = vmatmul.mubr.f32.gmra.mxu0 %v696
        %v698 = vpop.f32.mrf.mxu0
        %v699 = vadd.f32 %v607, %v698
        %v700 = vpop.f32.mrf.mxu0
        %701 = vdwg.mxu0
        %702 = vmatprep.subr.mxu0 0.0
        %703 = vmatpush1.msra.mxu0 0.0
        %704 = vmatprep.subr.mxu0 0.0
        %705 = vmatpush1.msra.mxu0 0.0
        %706 = vmatprep.subr.mxu0 0.0
        %707 = vmatpush1.msra.mxu0 0.0
        %708 = vmatprep.subr.mxu0 0.0
        %709 = vmatpush1.msra.mxu0 0.0
        %710 = vmatprep.subr.mxu0 0.0
        %711 = vmatpush1.msra.mxu0 0.0
        %712 = vmatprep.subr.mxu0 0.0
        %713 = vmatpush1.msra.mxu0 0.0
        %714 = vmatprep.subr.mxu0 0.0
        %715 = vmatpush1.msra.mxu0 0.0
        %716 = vmatprep.subr.mxu0 0.0
        %717 = vmatpush1.msra.mxu0 0.0
        %718 = vmatprep.subr.mxu0 0.0
        %719 = vmatpush1.msra.mxu0 0.0
        %720 = vmatprep.subr.mxu0 0.0
        %721 = vmatpush1.msra.mxu0 0.0
        %722 = vmatprep.subr.mxu0 0.0
        %723 = vmatpush1.msra.mxu0 0.0
        %724 = vmatprep.subr.mxu0 0.0
        %725 = vmatpush1.msra.mxu0 0.0
        %726 = vmatprep.subr.mxu0 0.0
        %727 = vmatpush1.msra.mxu0 0.0
        %728 = vmatprep.subr.mxu0 0.0
        %v729 = vand.u32 %v389, 4294901760
        %v730 = vsub.f32 %v389, %v729
        %731 = vmatpush1.msra.mxu0 %v730
        %732 = vmatprep.subr.mxu0 0.0
        %v733 = vand.u32 %v388, 4294901760
        %v734 = vsub.f32 %v388, %v733
        %735 = vmatpush1.msra.mxu0 %v734
        %736 = vmatprep.subr.mxu0 0.0
        %v737 = vand.u32 %v387, 4294901760
        %v738 = vsub.f32 %v387, %v737
        %739 = vmatpush1.msra.mxu0 %v738
        %740 = vmatprep.subr.mxu0 0.0
        %741 = vmatpush2.msra.mxu0 0.0
        %742 = vmatprep.subr.mxu0 0.0
        %743 = vmatpush2.msra.mxu0 0.0
        %744 = vmatprep.subr.mxu0 0.0
        %745 = vmatpush2.msra.mxu0 0.0
        %746 = vmatprep.subr.mxu0 0.0
        %747 = vmatpush2.msra.mxu0 0.0
        %748 = vmatprep.subr.mxu0 0.0
        %749 = vmatpush2.msra.mxu0 0.0
        %750 = vmatprep.subr.mxu0 0.0
        %751 = vmatpush2.msra.mxu0 0.0
        %752 = vmatprep.subr.mxu0 0.0
        %753 = vmatpush2.msra.mxu0 0.0
        %754 = vmatprep.subr.mxu0 0.0
        %755 = vmatpush2.msra.mxu0 0.0
        %756 = vmatprep.subr.mxu0 0.0
        %757 = vmatpush2.msra.mxu0 0.0
        %758 = vmatprep.subr.mxu0 0.0
        %759 = vmatpush2.msra.mxu0 0.0
        %760 = vmatprep.subr.mxu0 0.0
        %761 = vmatpush2.msra.mxu0 0.0
        %762 = vmatprep.subr.mxu0 0.0
        %763 = vmatpush2.msra.mxu0 0.0
        %764 = vmatprep.subr.mxu0 0.0
        %765 = vmatpush2.msra.mxu0 0.0
        %766 = vmatprep.subr.mxu0 0.0
        %767 = vmatpush2.msra.mxu0 0.0
        %768 = vmatprep.subr.mxu0 0.0
        %769 = vmatpush2.msra.mxu0 0.0
        %770 = vmatprep.subr.mxu0 0.0
        %771 = vmatpush2.msra.mxu0 0.0
        %772 = vmatprep.mubr.f32.mxu0 0.0
        %v773 = vand.u32 %v517, 4294901760
        %v774 = vsub.f32 %v517, %v773
        %775 = vmatmul.mubr.f32.gmra.mxu0 %v774
        %v776 = vpop.f32.mrf.mxu0
        %v777 = vadd.f32 %v693, %v776
        %v778 = vpop.f32.mrf.mxu0
        %779 = vmatprep.mubr.f32.mxu0 0.0
        %v780 = vand.u32 %v520, 4294901760
        %v781 = vsub.f32 %v520, %v780
        %782 = vmatmul.mubr.f32.gmra.mxu0 %v781
        %v783 = vpop.f32.mrf.mxu0
        %v784 = vadd.f32 %v699, %v783
        %v785 = vpop.f32.mrf.mxu0
        %786 = vdwg.mxu0
        %787 = vmatprep.subr.mxu0 0.0
        %788 = vmatpush1.msra.mxu0 0.0
        %789 = vmatprep.subr.mxu0 0.0
        %790 = vmatpush1.msra.mxu0 0.0
        %791 = vmatprep.subr.mxu0 0.0
        %792 = vmatpush1.msra.mxu0 0.0
        %793 = vmatprep.subr.mxu0 0.0
        %794 = vmatpush1.msra.mxu0 0.0
        %795 = vmatprep.subr.mxu0 0.0
        %796 = vmatpush1.msra.mxu0 0.0
        %797 = vmatprep.subr.mxu0 0.0
        %798 = vmatpush1.msra.mxu0 0.0
        %799 = vmatprep.subr.mxu0 0.0
        %800 = vmatpush1.msra.mxu0 0.0
        %801 = vmatprep.subr.mxu0 0.0
        %802 = vmatpush1.msra.mxu0 0.0
        %803 = vmatprep.subr.mxu0 0.0
        %804 = vmatpush1.msra.mxu0 0.0
        %805 = vmatprep.subr.mxu0 0.0
        %806 = vmatpush1.msra.mxu0 0.0
        %807 = vmatprep.subr.mxu0 0.0
        %808 = vmatpush1.msra.mxu0 0.0
        %809 = vmatprep.subr.mxu0 0.0
        %810 = vmatpush1.msra.mxu0 0.0
        %811 = vmatprep.subr.mxu0 0.0
        %812 = vmatpush1.msra.mxu0 0.0
        %813 = vmatprep.subr.mxu0 0.0
        %v814 = vand.u32 %v389, 4294901760
        %815 = vmatpush1.msra.mxu0 %v814
        %816 = vmatprep.subr.mxu0 0.0
        %v817 = vand.u32 %v388, 4294901760
        %818 = vmatpush1.msra.mxu0 %v817
        %819 = vmatprep.subr.mxu0 0.0
        %v820 = vand.u32 %v387, 4294901760
        %821 = vmatpush1.msra.mxu0 %v820
        %822 = vmatprep.subr.mxu0 0.0
        %823 = vmatpush2.msra.mxu0 0.0
        %824 = vmatprep.subr.mxu0 0.0
        %825 = vmatpush2.msra.mxu0 0.0
        %826 = vmatprep.subr.mxu0 0.0
        %827 = vmatpush2.msra.mxu0 0.0
        %828 = vmatprep.subr.mxu0 0.0
        %829 = vmatpush2.msra.mxu0 0.0
        %830 = vmatprep.subr.mxu0 0.0
        %831 = vmatpush2.msra.mxu0 0.0
        %832 = vmatprep.subr.mxu0 0.0
        %833 = vmatpush2.msra.mxu0 0.0
        %834 = vmatprep.subr.mxu0 0.0
        %835 = vmatpush2.msra.mxu0 0.0
        %836 = vmatprep.subr.mxu0 0.0
        %837 = vmatpush2.msra.mxu0 0.0
        %838 = vmatprep.subr.mxu0 0.0
        %839 = vmatpush2.msra.mxu0 0.0
        %840 = vmatprep.subr.mxu0 0.0
        %841 = vmatpush2.msra.mxu0 0.0
        %842 = vmatprep.subr.mxu0 0.0
        %843 = vmatpush2.msra.mxu0 0.0
        %844 = vmatprep.subr.mxu0 0.0
        %845 = vmatpush2.msra.mxu0 0.0
        %846 = vmatprep.subr.mxu0 0.0
        %847 = vmatpush2.msra.mxu0 0.0
        %848 = vmatprep.subr.mxu0 0.0
        %849 = vmatpush2.msra.mxu0 0.0
        %850 = vmatprep.subr.mxu0 0.0
        %851 = vmatpush2.msra.mxu0 0.0
        %852 = vmatprep.subr.mxu0 0.0
        %853 = vmatpush2.msra.mxu0 0.0
        %854 = vmatprep.mubr.f32.mxu0 0.0
        %v855 = vand.u32 %v517, 4294901760
        %v856 = vsub.f32 %v517, %v855
        %v857 = vand.u32 %v856, 4294901760
        %858 = vmatmul.mubr.f32.gmra.mxu0 %v857
        %v859 = vpop.f32.mrf.mxu0
        %v860 = vadd.f32 %v777, %v859
        %v861 = vpop.f32.mrf.mxu0
        %862 = vmatprep.mubr.f32.mxu0 0.0
        %v863 = vand.u32 %v520, 4294901760
        %v864 = vsub.f32 %v520, %v863
        %v865 = vand.u32 %v864, 4294901760
        %866 = vmatmul.mubr.f32.gmra.mxu0 %v865
        %v867 = vpop.f32.mrf.mxu0
        %v868 = vadd.f32 %v784, %v867
        %v869 = vpop.f32.mrf.mxu0
        %870 = vdwg.mxu0
        %871 = vmatprep.subr.mxu0 0.0
        %872 = vmatpush1.msra.mxu0 0.0
        %873 = vmatprep.subr.mxu0 0.0
        %874 = vmatpush1.msra.mxu0 0.0
        %875 = vmatprep.subr.mxu0 0.0
        %876 = vmatpush1.msra.mxu0 0.0
        %877 = vmatprep.subr.mxu0 0.0
        %878 = vmatpush1.msra.mxu0 0.0
        %879 = vmatprep.subr.mxu0 0.0
        %880 = vmatpush1.msra.mxu0 0.0
        %881 = vmatprep.subr.mxu0 0.0
        %882 = vmatpush1.msra.mxu0 0.0
        %883 = vmatprep.subr.mxu0 0.0
        %884 = vmatpush1.msra.mxu0 0.0
        %885 = vmatprep.subr.mxu0 0.0
        %886 = vmatpush1.msra.mxu0 0.0
        %887 = vmatprep.subr.mxu0 0.0
        %888 = vmatpush1.msra.mxu0 0.0
        %889 = vmatprep.subr.mxu0 0.0
        %890 = vmatpush1.msra.mxu0 0.0
        %891 = vmatprep.subr.mxu0 0.0
        %892 = vmatpush1.msra.mxu0 0.0
        %893 = vmatprep.subr.mxu0 0.0
        %894 = vmatpush1.msra.mxu0 0.0
        %895 = vmatprep.subr.mxu0 0.0
        %896 = vmatpush1.msra.mxu0 0.0
        %897 = vmatprep.subr.mxu0 0.0
        %v898 = vand.u32 %v389, 4294901760
        %v899 = vsub.f32 %v389, %v898
        %v900 = vand.u32 %v899, 4294901760
        %901 = vmatpush1.msra.mxu0 %v900
        %902 = vmatprep.subr.mxu0 0.0
        %v903 = vand.u32 %v388, 4294901760
        %v904 = vsub.f32 %v388, %v903
        %v905 = vand.u32 %v904, 4294901760
        %906 = vmatpush1.msra.mxu0 %v905
        %907 = vmatprep.subr.mxu0 0.0
        %v908 = vand.u32 %v387, 4294901760
        %v909 = vsub.f32 %v387, %v908
        %v910 = vand.u32 %v909, 4294901760
        %911 = vmatpush1.msra.mxu0 %v910
        %912 = vmatprep.subr.mxu0 0.0
        %913 = vmatpush2.msra.mxu0 0.0
        %914 = vmatprep.subr.mxu0 0.0
        %915 = vmatpush2.msra.mxu0 0.0
        %916 = vmatprep.subr.mxu0 0.0
        %917 = vmatpush2.msra.mxu0 0.0
        %918 = vmatprep.subr.mxu0 0.0
        %919 = vmatpush2.msra.mxu0 0.0
        %920 = vmatprep.subr.mxu0 0.0
        %921 = vmatpush2.msra.mxu0 0.0
        %922 = vmatprep.subr.mxu0 0.0
        %923 = vmatpush2.msra.mxu0 0.0
        %924 = vmatprep.subr.mxu0 0.0
        %925 = vmatpush2.msra.mxu0 0.0
        %926 = vmatprep.subr.mxu0 0.0
        %927 = vmatpush2.msra.mxu0 0.0
        %928 = vmatprep.subr.mxu0 0.0
        %929 = vmatpush2.msra.mxu0 0.0
        %930 = vmatprep.subr.mxu0 0.0
        %931 = vmatpush2.msra.mxu0 0.0
        %932 = vmatprep.subr.mxu0 0.0
        %933 = vmatpush2.msra.mxu0 0.0
        %934 = vmatprep.subr.mxu0 0.0
        %935 = vmatpush2.msra.mxu0 0.0
        %936 = vmatprep.subr.mxu0 0.0
        %937 = vmatpush2.msra.mxu0 0.0
        %938 = vmatprep.subr.mxu0 0.0
        %939 = vmatpush2.msra.mxu0 0.0
        %940 = vmatprep.subr.mxu0 0.0
        %941 = vmatpush2.msra.mxu0 0.0
        %942 = vmatprep.subr.mxu0 0.0
        %943 = vmatpush2.msra.mxu0 0.0
        %944 = vmatprep.mubr.f32.mxu0 0.0
        %v945 = vand.u32 %v517, 4294901760
        %946 = vmatmul.mubr.f32.gmra.mxu0 %v945
        %v947 = vpop.f32.mrf.mxu0
        %v948 = vadd.f32 %v860, %v947
        %v949 = vpop.f32.mrf.mxu0
        %950 = vmatprep.mubr.f32.mxu0 0.0
        %v951 = vand.u32 %v520, 4294901760
        %952 = vmatmul.mubr.f32.gmra.mxu0 %v951
        %v953 = vpop.f32.mrf.mxu0
        %v954 = vadd.f32 %v868, %v953
        %v955 = vpop.f32.mrf.mxu0
        %956 = vdwg.mxu0
        %957 = vmatprep.subr.mxu0 0.0
        %958 = vmatpush1.msra.mxu0 0.0
        %959 = vmatprep.subr.mxu0 0.0
        %960 = vmatpush1.msra.mxu0 0.0
        %961 = vmatprep.subr.mxu0 0.0
        %962 = vmatpush1.msra.mxu0 0.0
        %963 = vmatprep.subr.mxu0 0.0
        %964 = vmatpush1.msra.mxu0 0.0
        %965 = vmatprep.subr.mxu0 0.0
        %966 = vmatpush1.msra.mxu0 0.0
        %967 = vmatprep.subr.mxu0 0.0
        %968 = vmatpush1.msra.mxu0 0.0
        %969 = vmatprep.subr.mxu0 0.0
        %970 = vmatpush1.msra.mxu0 0.0
        %971 = vmatprep.subr.mxu0 0.0
        %972 = vmatpush1.msra.mxu0 0.0
        %973 = vmatprep.subr.mxu0 0.0
        %974 = vmatpush1.msra.mxu0 0.0
        %975 = vmatprep.subr.mxu0 0.0
        %976 = vmatpush1.msra.mxu0 0.0
        %977 = vmatprep.subr.mxu0 0.0
        %978 = vmatpush1.msra.mxu0 0.0
        %979 = vmatprep.subr.mxu0 0.0
        %980 = vmatpush1.msra.mxu0 0.0
        %981 = vmatprep.subr.mxu0 0.0
        %982 = vmatpush1.msra.mxu0 0.0
        %983 = vmatprep.subr.mxu0 0.0
        %v984 = vand.u32 %v389, 4294901760
        %985 = vmatpush1.msra.mxu0 %v984
        %986 = vmatprep.subr.mxu0 0.0
        %v987 = vand.u32 %v388, 4294901760
        %988 = vmatpush1.msra.mxu0 %v987
        %989 = vmatprep.subr.mxu0 0.0
        %v990 = vand.u32 %v387, 4294901760
        %991 = vmatpush1.msra.mxu0 %v990
        %992 = vmatprep.subr.mxu0 0.0
        %993 = vmatpush2.msra.mxu0 0.0
        %994 = vmatprep.subr.mxu0 0.0
        %995 = vmatpush2.msra.mxu0 0.0
        %996 = vmatprep.subr.mxu0 0.0
        %997 = vmatpush2.msra.mxu0 0.0
        %998 = vmatprep.subr.mxu0 0.0
        %999 = vmatpush2.msra.mxu0 0.0
        %1000 = vmatprep.subr.mxu0 0.0
        %1001 = vmatpush2.msra.mxu0 0.0
        %1002 = vmatprep.subr.mxu0 0.0
        %1003 = vmatpush2.msra.mxu0 0.0
        %1004 = vmatprep.subr.mxu0 0.0
        %1005 = vmatpush2.msra.mxu0 0.0
        %1006 = vmatprep.subr.mxu0 0.0
        %1007 = vmatpush2.msra.mxu0 0.0
        %1008 = vmatprep.subr.mxu0 0.0
        %1009 = vmatpush2.msra.mxu0 0.0
        %1010 = vmatprep.subr.mxu0 0.0
        %1011 = vmatpush2.msra.mxu0 0.0
        %1012 = vmatprep.subr.mxu0 0.0
        %1013 = vmatpush2.msra.mxu0 0.0
        %1014 = vmatprep.subr.mxu0 0.0
        %1015 = vmatpush2.msra.mxu0 0.0
        %1016 = vmatprep.subr.mxu0 0.0
        %1017 = vmatpush2.msra.mxu0 0.0
        %1018 = vmatprep.subr.mxu0 0.0
        %1019 = vmatpush2.msra.mxu0 0.0
        %1020 = vmatprep.subr.mxu0 0.0
        %1021 = vmatpush2.msra.mxu0 0.0
        %1022 = vmatprep.subr.mxu0 0.0
        %1023 = vmatpush2.msra.mxu0 0.0
        %1024 = vmatprep.mubr.f32.mxu0 0.0
        %v1025 = vand.u32 %v517, 4294901760
        %1026 = vmatmul.mubr.f32.gmra.mxu0 %v1025
        %v1027 = vpop.f32.mrf.mxu0
        %v1028 = vadd.f32 %v948, %v1027
        %v1029 = vpop.f32.mrf.mxu0
        %1030 = vmatprep.mubr.f32.mxu0 0.0
        %v1031 = vand.u32 %v520, 4294901760
        %1032 = vmatmul.mubr.f32.gmra.mxu0 %v1031
        %v1033 = vpop.f32.mrf.mxu0
        %v1034 = vadd.f32 %v954, %v1033
        %v1035 = vpop.f32.mrf.mxu0
        %1036 = vdwg.mxu0
        %v1037 = vadd.f32 %v513, %v1028
        %v1038 = vadd.f32 %v514, %v1034
        %vm1039 = vcmask 130048
        %1040 = vst.msk [vmem:[%s356] sm:$0xff] %vm1039, %v1037
        %1041 = vst.msk [vmem:[%s356 + $0x8] sm:$0xff] %vm1039, %v1038
        // Predicated region
        $region65: #{tpu_custom_call.1} parent=43 // pred_check
          %p1042 = pneg %p376
        $region66: #{tpu_custom_call.1} parent=43 // pred_check_branch
          %1044 = sbr.rel (%p1042) target = $region68
        $region67: #{tpu_custom_call.1} parent=43 // pred_region
          %v1045 = vld [vmem:[%s356] sm:$0xff]
          %v1046 = vld [vmem:[%s356 + $0x8] sm:$0xff]
          %v1047 = vround.ne.pseudo %v1045
          %v1048 = vround.ne.pseudo %v1046
          %v1049 = vmax.f32 %v1047, 0.0
          %v1050 = vmax.f32 %v1048, 0.0
          %v1051 = vmin.f32 %v1049, 255.0
          %v1052 = vmin.f32 %v1050, 255.0
          %s1053 = sld [smem:[#allocation8 + %s30]]
          %v1054 = vstv %s1053
          %v1055 = vmul.f32 %v1051, %v1054
          %v1056 = vmul.f32 %v1052, %v1054
          %s1057 = sld [smem:[#allocation9 + %s30]]
          %v1058 = vstv %s1057
          %v1059 = vadd.f32 %v1055, %v1058
          %v1060 = vadd.f32 %v1056, %v1058
          %1061 = vst.msk [vmem:[%s356] sm:$0xff] %vm1039, %v1059
          %1062 = vst.msk [vmem:[%s356 + $0x8] sm:$0xff] %vm1039, %v1060
        $region68: #{tpu_custom_call.1} parent=43 // pred_fallthru
          _
        %s1063 = sand.u32 %s193, 1
        %s1064 = scalar_lea.sflag [#allocation4], %s1063
        %s1065 = sand.u32 %s193, 1
        %s1066 = smul.addr %s1065, 16
        %s1067 = scalar_lea.vmem [#allocation11], %s1066
        // Predicated region
        $region69: #{tpu_custom_call.1} parent=43 // pred_check
          %p1068 = pneg %p203
        $region70: #{tpu_custom_call.1} parent=43 // pred_check_branch
          %1070 = sbr.rel (%p1068) target = $region72
        $region71: #{tpu_custom_call.1} parent=43 // pred_region
          %s1072 = ssub.s32 256, 256
          %1073 = vsyncadd %s1064, %s1072
          %s1074 = smul.addr %s30, 2
          %s1075 = smul.addr %s29, 6
          %s1076 = sadd.s32 %s1074, %s1075
          %s1077 = smul.addr %s1076, 128
          %s1078 = scalar_lea.hbm %s6, %s1077
          %s1079 = sshll.u32 %s1067, 4
          %s1080 = int_to_ptr.vmem [resolvable:$true] %s1079
          %1085 = dma.vmem_to_hbm [thread:$0]  %s1080, 256, %s1078, %s1064, 128, 128, 8
        $region72: #{tpu_custom_call.1} parent=43 // pred_fallthru
          _
      $region44: #{tpu_custom_call.1} parent=5 // pred_fallthru
        _
      %p1086 = scmp.le.s32.totalorder 2, %s19
      // Predicated region
      $region73: #{tpu_custom_call.1} parent=5 // pred_check
        %p1087 = pneg %p1086
      $region74: #{tpu_custom_call.1} parent=5 // pred_check_branch
        %1089 = sbr.rel (%p1087) target = $region76
      $region75: #{tpu_custom_call.1} parent=5 // pred_region
        %s1090 = ssub.s32 %s19, 2
        // Predicated region
        $region77: #{tpu_custom_call.1} parent=75 // pred_check
          %p1091 = pneg %p209
        $region78: #{tpu_custom_call.1} parent=75 // pred_check_branch
          %1093 = sbr.rel (%p1091) target = $region80
        $region79: #{tpu_custom_call.1} parent=75 // pred_region
          %s1094 = sand.u32 %s194, 1
          %s1095 = scalar_lea.sflag [#allocation4], %s1094
          %s1096 = sand.u32 %s194, 1
          %s1097 = smul.addr %s1096, 16
          %s1098 = scalar_lea.vmem [#allocation11], %s1097
          %1099 = dma.done %s1095, 256
        $region80: #{tpu_custom_call.1} parent=75 // pred_fallthru
          _
      $region76: #{tpu_custom_call.1} parent=5 // pred_fallthru
        _
    $region6: #{tpu_custom_call.1} parent=1 // loop_footer
      %s23 = sadd.s32 1, %s19
    $region7: #{tpu_custom_call.1} parent=1 // loop_footer_branch
      %18 = sbr.rel target = $region3
    $region8: #{tpu_custom_call.1} parent=1 // loop_exit
      _
    %1100 = vsyncpa [#allocation3], 1
    %s1101 = scalar_lea.sflag [#allocation3], 1
    %1102 = vsyncpa %s1101, 1
    %1103 = vsyncpa [#allocation7], 1
    %1104 = vsyncpa [#allocation4], 1
    %s1105 = scalar_lea.sflag [#allocation4], 1
    %1106 = vsyncpa %s1105, 1
    %1107 = vsyncpa [#allocation5], 1
    %s1108 = scalar_lea.sflag [#allocation5], 1
    %1109 = vsyncpa %s1108, 1
    %1110 = vsyncpa [#allocation10], 1

</llo_original>
